<compile_context>
chip_gen: v6e
topology: v6e:2x2x1
jax: 0.10.0
libtpu: 0.0.40
codegen_flags: <defaults>
</compile_context>

<pallas_src>
import functools
import math

import jax
import jax.numpy as jnp
from jax.experimental import pallas as pl
from jax.experimental.pallas import tpu as pltpu


def _round_up(x, m):
    return ((x + m - 1) // m) * m


_VMEM_TARGET_BYTES = 40 * 1024 * 1024   # keep well under v7x 64 MiB / TC


# ----------------------------------------------------------------------------
# Fused kernel: the whole MLP for one (TM, K) batch tile.
#   refs = (x_ref, w0_ref, b0_ref, w1_ref, b1_ref, ..., o_ref)
#   Weights are pre-transposed (K_i, N_i), zero-padded, possibly bf16.
#   Intermediates stay in vregs/VMEM for the whole chain (never hit HBM).
# ----------------------------------------------------------------------------
def _fused_mlp_kernel(*refs, n_layers):
    x_ref = refs[0]
    o_ref = refs[1 + 2 * n_layers]

    h = x_ref[...].astype(jnp.float32)                # matches x.float()
    for i in range(n_layers):                         # statically unrolled
        w_ref = refs[1 + 2 * i]
        b_ref = refs[2 + 2 * i]
        lhs = h.astype(w_ref.dtype)                   # bf16 MXU inputs iff weights bf16
        h = jnp.dot(lhs, w_ref[...], preferred_element_type=jnp.float32)
        h = h + b_ref[...].astype(jnp.float32)        # bias add / ReLU stay f32
        if i < n_layers - 1:                          # hidden layers only
            h = jnp.maximum(h, 0.0)
    o_ref[...] = h.astype(o_ref.dtype)


# ----------------------------------------------------------------------------
# One-time parameter preparation (hoisted out of the per-call path).
# Weights come in already transposed as (fan_in, fan_out) == W.T.
# ----------------------------------------------------------------------------
def prepare_params(params, n_in, *, use_bf16=False):
    n_out = params[-1][0].shape[1]
    dims = [n_in] + [w_t.shape[1] for (w_t, _) in params]
    # Input dim: pad only to the 8-sublane multiple.  Hidden/output: 128 lanes.
    pdims = [_round_up(n_in, 8)] + [_round_up(d, 128) for d in dims[1:]]
    w_dtype = jnp.bfloat16 if use_bf16 else jnp.float32

    padded = []
    for i, (w_t, b) in enumerate(params):
        Kp, Np = pdims[i], pdims[i + 1]
        w_p = (jnp.zeros((Kp, Np), w_dtype)
               .at[: w_t.shape[0], : w_t.shape[1]].set(w_t.astype(w_dtype)))
        b_p = (jnp.zeros((1, Np), jnp.float32)
               .at[0, : b.shape[0]].set(b.astype(jnp.float32)))
        padded.append((w_p, b_p))

    return {"params": tuple(padded), "n_in": n_in, "n_out": n_out}


def _vmem_budget(TM, k_in, pdims, param_bytes, single_buffer_params):
    pb = param_bytes if single_buffer_params else 2 * param_bytes
    io = 2 * TM * k_in * 4 + 2 * TM * pdims[-1] * 4     # double-buffered x / out tiles
    live = 2 * TM * max(pdims) * 4                      # live f32 intermediates
    return pb + io + live


# ----------------------------------------------------------------------------
# Jitted forward: pad rows, tile the batch dim, run one pallas_call, slice the
# real output back and squeeze (matching NN.forward).
# ----------------------------------------------------------------------------
@functools.partial(
    jax.jit,
    static_argnames=("n_in", "n_out", "max_tm", "single_buffer_params"))
def _forward_impl(pparams, x, *, n_in, n_out, max_tm=1024,
                  single_buffer_params=True):
    x = x.reshape(-1, n_in).astype(jnp.float32)         # x.view(-1, n_in).float()
    M = x.shape[0]
    n_layers = len(pparams)
    k_in = pparams[0][0].shape[0]                       # sublane-padded input width
    pdims = [k_in] + [w.shape[1] for (w, _) in pparams]
    param_bytes = sum(int(w.size) * w.dtype.itemsize + int(b.size) * 4
                      for w, b in pparams)

    # ---- batch tiling: minimal padding, >=2 programs for large M (v7x 2 TCs),
    # shrink until the VMEM budget fits. ----
    nt = max(1, pl.cdiv(M, max_tm))
    if nt == 1 and M >= 256:
        nt = 2
    TM = _round_up(pl.cdiv(M, nt), 8)
    while (_vmem_budget(TM, k_in, pdims, param_bytes, single_buffer_params)
           > _VMEM_TARGET_BYTES and TM > 8):
        nt += 1
        TM = _round_up(pl.cdiv(M, nt), 8)
    M_pad = nt * TM

    budget = _vmem_budget(TM, k_in, pdims, param_bytes, single_buffer_params)
    vmem_limit = int(min(64 * 1024 * 1024,
                         max(2 * budget, 32 * 1024 * 1024)))

    # ---- pad x rows (and the tiny sublane pad of n_in) only if needed ----
    if M_pad == M and k_in == n_in:
        x_p = x
    else:
        x_p = jnp.zeros((M_pad, k_in), jnp.float32).at[:M, :n_in].set(x)

    # ---- block specs: x/out tiled over the batch grid, params resident ----
    resident_kwargs = (dict(pipeline_mode=pl.Buffered(1))
                       if single_buffer_params else {})
    in_specs = [pl.BlockSpec((TM, k_in), lambda i: (i, 0))]
    inputs = [x_p]
    for w_p, b_p in pparams:
        in_specs.append(pl.BlockSpec(w_p.shape, lambda i: (0, 0),
                                     **resident_kwargs))
        in_specs.append(pl.BlockSpec(b_p.shape, lambda i: (0, 0),
                                     **resident_kwargs))
        inputs.append(w_p)
        inputs.append(b_p)
    out_spec = pl.BlockSpec((TM, pdims[-1]), lambda i: (i, 0))

    flops = sum(2 * M_pad * pdims[i] * pdims[i + 1] for i in range(n_layers))
    bytes_accessed = int(x_p.size) * 4 + param_bytes + M_pad * pdims[-1] * 4

    out_p = pl.pallas_call(
        functools.partial(_fused_mlp_kernel, n_layers=n_layers),
        out_shape=jax.ShapeDtypeStruct((M_pad, pdims[-1]), jnp.float32),
        grid_spec=pl.GridSpec(
            grid=(nt,),
            in_specs=in_specs,
            out_specs=out_spec,
        ),
        compiler_params=pltpu.CompilerParams(
            dimension_semantics=("parallel",),
            vmem_limit_bytes=vmem_limit,
        ),
        cost_estimate=pl.CostEstimate(
            flops=int(flops), transcendentals=0,
            bytes_accessed=int(bytes_accessed)),
    )(*inputs)

    out = out_p[:M, :n_out]                             # drop batch + lane padding
    return jnp.squeeze(out)                             # x.squeeze()


def nn_forward(prepared, x):
    pparams = tuple(prepared["params"])
    n_in, n_out = prepared["n_in"], prepared["n_out"]
    try:
        return _forward_impl(pparams, x, n_in=n_in, n_out=n_out,
                             single_buffer_params=True)
    except Exception:
        # Fallback if this jax build rejects single-buffered (Buffered(1))
        # resident operands; semantics are identical, only VMEM use differs.
        return _forward_impl(pparams, x, n_in=n_in, n_out=n_out,
                             single_buffer_params=False)


# ----------------------------------------------------------------------------
# Parameter init mimicking nn.Linear default: U(-1/sqrt(fan_in), 1/sqrt(fan_in)).
# Weights stored already transposed as (fan_in, fan_out) == W.T.
# ----------------------------------------------------------------------------
def init_nn_params(key, n_in, n_out, n_mids):
    dims = [n_in] + list(n_mids) + [n_out]
    params = []
    for i in range(len(dims) - 1):
        fan_in, fan_out = dims[i], dims[i + 1]
        key, kw, kb = jax.random.split(key, 3)
        bound = 1.0 / math.sqrt(fan_in)
        w_t = jax.random.uniform(kw, (fan_in, fan_out), jnp.float32, -bound, bound)
        b = jax.random.uniform(kb, (fan_out,), jnp.float32, -bound, bound)
        params.append((w_t, b))
    return params


def _reference(params, x, n_in):
    r = x.reshape(-1, n_in).astype(jnp.float32)
    for i, (w_t, b) in enumerate(params):
        r = r @ w_t + b
        if i < len(params) - 1:
            r = jnp.maximum(r, 0.0)
    return jnp.squeeze(r)


if __name__ == "__main__":
    key = jax.random.PRNGKey(0)

    # --- Config 1: NN(32, 16, 64, 128), x of shape (2, 4, 32) -> view(-1, 32) --
    n_in, n_out, n_mids = 32, 16, (64, 128)
    key, kp, kx = jax.random.split(key, 3)
    params = init_nn_params(kp, n_in, n_out, n_mids)
    prepared = prepare_params(params, n_in)              # f32 path, padded once
    x = jax.random.normal(kx, (2, 4, n_in), jnp.float32)

    out = jax.block_until_ready(nn_forward(prepared, x))
    ref = _reference(params, x, n_in)
    assert out.shape == (8, n_out), out.shape
    assert bool(jnp.all(jnp.isfinite(out)))
    assert jnp.allclose(out, ref, atol=1e-4, rtol=1e-4), float(
        jnp.max(jnp.abs(out - ref)))

    # --- Config 2: no hidden layers, scalar output head (checks squeeze) ------
    n_in2, n_out2, batch2 = 32, 1, 8
    key, kp2, kx2 = jax.random.split(key, 3)
    params2 = init_nn_params(kp2, n_in2, n_out2, ())
    prepared2 = prepare_params(params2, n_in2)
    x2 = jax.random.normal(kx2, (batch2, n_in2), jnp.float32)

    out2 = jax.block_until_ready(nn_forward(prepared2, x2))
    ref2 = _reference(params2, x2, n_in2)
    assert out2.shape == (batch2,), out2.shape
    assert jnp.allclose(out2, ref2, atol=1e-4, rtol=1e-4)

    # --- Config 3: bf16 MXU inputs, ragged sizes (n_in=20, batch=5) -----------
    n_in3, n_out3, n_mids3, batch3 = 20, 10, (48,), 5
    key, kp3, kx3 = jax.random.split(key, 3)
    params3 = init_nn_params(kp3, n_in3, n_out3, n_mids3)
    prepared3 = prepare_params(params3, n_in3, use_bf16=True)   # opt-in bf16
    x3 = jax.random.normal(kx3, (batch3, n_in3), jnp.float32)

    out3 = jax.block_until_ready(nn_forward(prepared3, x3))
    ref3 = _reference(params3, x3, n_in3)
    assert out3.shape == (batch3, n_out3), out3.shape
    assert jnp.allclose(out3, ref3, atol=5e-2, rtol=5e-2), float(
        jnp.max(jnp.abs(out3 - ref3)))

    print("KERNEL_OK")
</pallas_src>

<mosaic_0001>
module attributes {stable_mosaic.version = 11 : i64} {
  func.func @_fused_mlp_kernel(%arg0: i32, %arg1: memref<8x32xf32, #tpu.memory_space<vmem>>, %arg2: memref<32x128xf32, #tpu.memory_space<vmem>>, %arg3: memref<1x128xf32, #tpu.memory_space<vmem>>, %arg4: memref<128x128xf32, #tpu.memory_space<vmem>>, %arg5: memref<1x128xf32, #tpu.memory_space<vmem>>, %arg6: memref<128x128xf32, #tpu.memory_space<vmem>>, %arg7: memref<1x128xf32, #tpu.memory_space<vmem>>, %arg8: memref<8x128xf32, #tpu.memory_space<vmem>>) attributes {dimension_semantics = [#tpu.dimension_semantics<parallel>], iteration_bounds = array<i64: 1>, scalar_prefetch = 0 : i64, scratch_operands = 0 : i64, tpu.core_type = #tpu.core_type<tc>, window_params = [{transform_indices = @transform_0, window_bounds = array<i64: 8, 32>}, {pipeline_mode = #tpu.pipeline_mode<synchronous>, transform_indices = @transform_1, window_bounds = array<i64: 32, 128>}, {pipeline_mode = #tpu.pipeline_mode<synchronous>, transform_indices = @transform_2, window_bounds = array<i64: 1, 128>}, {pipeline_mode = #tpu.pipeline_mode<synchronous>, transform_indices = @transform_3, window_bounds = array<i64: 128, 128>}, {pipeline_mode = #tpu.pipeline_mode<synchronous>, transform_indices = @transform_4, window_bounds = array<i64: 1, 128>}, {pipeline_mode = #tpu.pipeline_mode<synchronous>, transform_indices = @transform_5, window_bounds = array<i64: 128, 128>}, {pipeline_mode = #tpu.pipeline_mode<synchronous>, transform_indices = @transform_6, window_bounds = array<i64: 1, 128>}, {transform_indices = @transform_7, window_bounds = array<i64: 8, 128>}]} {
    %c0 = arith.constant 0 : index
    %c0_0 = arith.constant 0 : index
    %0 = vector.load %arg1[%c0, %c0_0] : memref<8x32xf32, #tpu.memory_space<vmem>>, vector<8x32xf32>
    %c0_1 = arith.constant 0 : index
    %c0_2 = arith.constant 0 : index
    %1 = vector.load %arg2[%c0_1, %c0_2] : memref<32x128xf32, #tpu.memory_space<vmem>>, vector<32x128xf32>
    %cst = arith.constant dense<0.000000e+00> : vector<8x128xf32>
    %2 = tpu.matmul %0, %1, %cst {dimension_numbers = #tpu.dot_dimension_numbers<[1], [0], [0], [1], [0, 0, 1, 1], [], []>} : vector<8x32xf32>, vector<32x128xf32>, vector<8x128xf32> -> vector<8x128xf32>
    %c0_3 = arith.constant 0 : index
    %c0_4 = arith.constant 0 : index
    %3 = vector.load %arg3[%c0_3, %c0_4] : memref<1x128xf32, #tpu.memory_space<vmem>>, vector<1x128xf32>
    %4 = vector.broadcast %3 : vector<1x128xf32> to vector<8x128xf32>
    %5 = arith.addf %2, %4 : vector<8x128xf32>
    %cst_5 = arith.constant 0.000000e+00 : f32
    %6 = vector.broadcast %cst_5 : f32 to vector<8x128xf32>
    %7 = arith.maximumf %5, %6 : vector<8x128xf32>
    %c0_6 = arith.constant 0 : index
    %c0_7 = arith.constant 0 : index
    %8 = vector.load %arg4[%c0_6, %c0_7] : memref<128x128xf32, #tpu.memory_space<vmem>>, vector<128x128xf32>
    %cst_8 = arith.constant dense<0.000000e+00> : vector<8x128xf32>
    %9 = tpu.matmul %7, %8, %cst_8 {dimension_numbers = #tpu.dot_dimension_numbers<[1], [0], [0], [1], [0, 0, 1, 1], [], []>} : vector<8x128xf32>, vector<128x128xf32>, vector<8x128xf32> -> vector<8x128xf32>
    %c0_9 = arith.constant 0 : index
    %c0_10 = arith.constant 0 : index
    %10 = vector.load %arg5[%c0_9, %c0_10] : memref<1x128xf32, #tpu.memory_space<vmem>>, vector<1x128xf32>
    %11 = vector.broadcast %10 : vector<1x128xf32> to vector<8x128xf32>
    %12 = arith.addf %9, %11 : vector<8x128xf32>
    %cst_11 = arith.constant 0.000000e+00 : f32
    %13 = vector.broadcast %cst_11 : f32 to vector<8x128xf32>
    %14 = arith.maximumf %12, %13 : vector<8x128xf32>
    %c0_12 = arith.constant 0 : index
    %c0_13 = arith.constant 0 : index
    %15 = vector.load %arg6[%c0_12, %c0_13] : memref<128x128xf32, #tpu.memory_space<vmem>>, vector<128x128xf32>
    %cst_14 = arith.constant dense<0.000000e+00> : vector<8x128xf32>
    %16 = tpu.matmul %14, %15, %cst_14 {dimension_numbers = #tpu.dot_dimension_numbers<[1], [0], [0], [1], [0, 0, 1, 1], [], []>} : vector<8x128xf32>, vector<128x128xf32>, vector<8x128xf32> -> vector<8x128xf32>
    %c0_15 = arith.constant 0 : index
    %c0_16 = arith.constant 0 : index
    %17 = vector.load %arg7[%c0_15, %c0_16] : memref<1x128xf32, #tpu.memory_space<vmem>>, vector<1x128xf32>
    %18 = vector.broadcast %17 : vector<1x128xf32> to vector<8x128xf32>
    %19 = arith.addf %16, %18 : vector<8x128xf32>
    %c0_17 = arith.constant 0 : index
    %c0_18 = arith.constant 0 : index
    %20 = vector.load %arg8[%c0_17, %c0_18] : memref<8x128xf32, #tpu.memory_space<vmem>>, vector<8x128xf32>
    tpu.vector_store %arg8[%c0_17, %c0_18], %19 {strides = array<i32>} : memref<8x128xf32, #tpu.memory_space<vmem>>, vector<8x128xf32>,
    return
  }
  func.func @transform_0(%arg0: i32) -> (i32, i32) {
    %c0_i32 = arith.constant 0 : i32
    %c0_i32_0 = arith.constant 0 : i32
    return %arg0, %c0_i32 : i32, i32
  }
  func.func @transform_1(%arg0: i32) -> (i32, i32) {
    %c0_i32 = arith.constant 0 : i32
    %c0_i32_0 = arith.constant 0 : i32
    %c0_i32_1 = arith.constant 0 : i32
    return %c0_i32, %c0_i32_0 : i32, i32
  }
  func.func @transform_2(%arg0: i32) -> (i32, i32) {
    %c0_i32 = arith.constant 0 : i32
    %c0_i32_0 = arith.constant 0 : i32
    %c0_i32_1 = arith.constant 0 : i32
    return %c0_i32, %c0_i32_0 : i32, i32
  }
  func.func @transform_3(%arg0: i32) -> (i32, i32) {
    %c0_i32 = arith.constant 0 : i32
    %c0_i32_0 = arith.constant 0 : i32
    %c0_i32_1 = arith.constant 0 : i32
    return %c0_i32, %c0_i32_0 : i32, i32
  }
  func.func @transform_4(%arg0: i32) -> (i32, i32) {
    %c0_i32 = arith.constant 0 : i32
    %c0_i32_0 = arith.constant 0 : i32
    %c0_i32_1 = arith.constant 0 : i32
    return %c0_i32, %c0_i32_0 : i32, i32
  }
  func.func @transform_5(%arg0: i32) -> (i32, i32) {
    %c0_i32 = arith.constant 0 : i32
    %c0_i32_0 = arith.constant 0 : i32
    %c0_i32_1 = arith.constant 0 : i32
    return %c0_i32, %c0_i32_0 : i32, i32
  }
  func.func @transform_6(%arg0: i32) -> (i32, i32) {
    %c0_i32 = arith.constant 0 : i32
    %c0_i32_0 = arith.constant 0 : i32
    %c0_i32_1 = arith.constant 0 : i32
    return %c0_i32, %c0_i32_0 : i32, i32
  }
  func.func @transform_7(%arg0: i32) -> (i32, i32) {
    %c0_i32 = arith.constant 0 : i32
    %c0_i32_0 = arith.constant 0 : i32
    return %arg0, %c0_i32 : i32, i32
  }
}

module attributes {stable_mosaic.version = 11 : i64} {
  func.func @_fused_mlp_kernel(%arg0: i32, %arg1: memref<8x32xf32, #tpu.memory_space<vmem>>, %arg2: memref<32x128xf32, #tpu.memory_space<vmem>>, %arg3: memref<1x128xf32, #tpu.memory_space<vmem>>, %arg4: memref<128x128xf32, #tpu.memory_space<vmem>>, %arg5: memref<1x128xf32, #tpu.memory_space<vmem>>, %arg6: memref<128x128xf32, #tpu.memory_space<vmem>>, %arg7: memref<1x128xf32, #tpu.memory_space<vmem>>, %arg8: memref<8x128xf32, #tpu.memory_space<vmem>>) attributes {dimension_semantics = [#tpu.dimension_semantics<parallel>], iteration_bounds = array<i64: 1>, scalar_prefetch = 0 : i64, scratch_operands = 0 : i64, tpu.core_type = #tpu.core_type<tc>, window_params = [{transform_indices = @transform_0, window_bounds = array<i64: 8, 32>}, {pipeline_mode = #tpu.pipeline_mode<synchronous>, transform_indices = @transform_1, window_bounds = array<i64: 32, 128>}, {pipeline_mode = #tpu.pipeline_mode<synchronous>, transform_indices = @transform_2, window_bounds = array<i64: 1, 128>}, {pipeline_mode = #tpu.pipeline_mode<synchronous>, transform_indices = @transform_3, window_bounds = array<i64: 128, 128>}, {pipeline_mode = #tpu.pipeline_mode<synchronous>, transform_indices = @transform_4, window_bounds = array<i64: 1, 128>}, {pipeline_mode = #tpu.pipeline_mode<synchronous>, transform_indices = @transform_5, window_bounds = array<i64: 128, 128>}, {pipeline_mode = #tpu.pipeline_mode<synchronous>, transform_indices = @transform_6, window_bounds = array<i64: 1, 128>}, {transform_indices = @transform_7, window_bounds = array<i64: 8, 128>}]} {
    %c0 = arith.constant 0 : index
    %c0_0 = arith.constant 0 : index
    %0 = vector.load %arg1[%c0, %c0_0] : memref<8x32xf32, #tpu.memory_space<vmem>>, vector<8x32xf32>
    %c0_1 = arith.constant 0 : index
    %c0_2 = arith.constant 0 : index
    %1 = vector.load %arg2[%c0_1, %c0_2] : memref<32x128xf32, #tpu.memory_space<vmem>>, vector<32x128xf32>
    %cst = arith.constant dense<0.000000e+00> : vector<8x128xf32>
    %2 = tpu.matmul %0, %1, %cst {dimension_numbers = #tpu.dot_dimension_numbers<[1], [0], [0], [1], [0, 0, 1, 1], [], []>} : vector<8x32xf32>, vector<32x128xf32>, vector<8x128xf32> -> vector<8x128xf32>
    %c0_3 = arith.constant 0 : index
    %c0_4 = arith.constant 0 : index
    %3 = vector.load %arg3[%c0_3, %c0_4] : memref<1x128xf32, #tpu.memory_space<vmem>>, vector<1x128xf32>
    %4 = vector.broadcast %3 : vector<1x128xf32> to vector<8x128xf32>
    %5 = arith.addf %2, %4 : vector<8x128xf32>
    %cst_5 = arith.constant 0.000000e+00 : f32
    %6 = vector.broadcast %cst_5 : f32 to vector<8x128xf32>
    %7 = arith.maximumf %5, %6 : vector<8x128xf32>
    %c0_6 = arith.constant 0 : index
    %c0_7 = arith.constant 0 : index
    %8 = vector.load %arg4[%c0_6, %c0_7] : memref<128x128xf32, #tpu.memory_space<vmem>>, vector<128x128xf32>
    %cst_8 = arith.constant dense<0.000000e+00> : vector<8x128xf32>
    %9 = tpu.matmul %7, %8, %cst_8 {dimension_numbers = #tpu.dot_dimension_numbers<[1], [0], [0], [1], [0, 0, 1, 1], [], []>} : vector<8x128xf32>, vector<128x128xf32>, vector<8x128xf32> -> vector<8x128xf32>
    %c0_9 = arith.constant 0 : index
    %c0_10 = arith.constant 0 : index
    %10 = vector.load %arg5[%c0_9, %c0_10] : memref<1x128xf32, #tpu.memory_space<vmem>>, vector<1x128xf32>
    %11 = vector.broadcast %10 : vector<1x128xf32> to vector<8x128xf32>
    %12 = arith.addf %9, %11 : vector<8x128xf32>
    %cst_11 = arith.constant 0.000000e+00 : f32
    %13 = vector.broadcast %cst_11 : f32 to vector<8x128xf32>
    %14 = arith.maximumf %12, %13 : vector<8x128xf32>
    %c0_12 = arith.constant 0 : index
    %c0_13 = arith.constant 0 : index
    %15 = vector.load %arg6[%c0_12, %c0_13] : memref<128x128xf32, #tpu.memory_space<vmem>>, vector<128x128xf32>
    %cst_14 = arith.constant dense<0.000000e+00> : vector<8x128xf32>
    %16 = tpu.matmul %14, %15, %cst_14 {dimension_numbers = #tpu.dot_dimension_numbers<[1], [0], [0], [1], [0, 0, 1, 1], [], []>} : vector<8x128xf32>, vector<128x128xf32>, vector<8x128xf32> -> vector<8x128xf32>
    %c0_15 = arith.constant 0 : index
    %c0_16 = arith.constant 0 : index
    %17 = vector.load %arg7[%c0_15, %c0_16] : memref<1x128xf32, #tpu.memory_space<vmem>>, vector<1x128xf32>
    %18 = vector.broadcast %17 : vector<1x128xf32> to vector<8x128xf32>
    %19 = arith.addf %16, %18 : vector<8x128xf32>
    %c0_17 = arith.constant 0 : index
    %c0_18 = arith.constant 0 : index
    %20 = vector.load %arg8[%c0_17, %c0_18] : memref<8x128xf32, #tpu.memory_space<vmem>>, vector<8x128xf32>
    tpu.vector_store %arg8[%c0_17, %c0_18], %19 {strides = array<i32>} : memref<8x128xf32, #tpu.memory_space<vmem>>, vector<8x128xf32>,
    return
  }
  func.func @transform_0(%arg0: i32) -> (i32, i32) {
    %c0_i32 = arith.constant 0 : i32
    %c0_i32_0 = arith.constant 0 : i32
    return %arg0, %c0_i32 : i32, i32
  }
  func.func @transform_1(%arg0: i32) -> (i32, i32) {
    %c0_i32 = arith.constant 0 : i32
    %c0_i32_0 = arith.constant 0 : i32
    %c0_i32_1 = arith.constant 0 : i32
    return %c0_i32, %c0_i32_0 : i32, i32
  }
  func.func @transform_2(%arg0: i32) -> (i32, i32) {
    %c0_i32 = arith.constant 0 : i32
    %c0_i32_0 = arith.constant 0 : i32
    %c0_i32_1 = arith.constant 0 : i32
    return %c0_i32, %c0_i32_0 : i32, i32
  }
  func.func @transform_3(%arg0: i32) -> (i32, i32) {
    %c0_i32 = arith.constant 0 : i32
    %c0_i32_0 = arith.constant 0 : i32
    %c0_i32_1 = arith.constant 0 : i32
    return %c0_i32, %c0_i32_0 : i32, i32
  }
  func.func @transform_4(%arg0: i32) -> (i32, i32) {
    %c0_i32 = arith.constant 0 : i32
    %c0_i32_0 = arith.constant 0 : i32
    %c0_i32_1 = arith.constant 0 : i32
    return %c0_i32, %c0_i32_0 : i32, i32
  }
  func.func @transform_5(%arg0: i32) -> (i32, i32) {
    %c0_i32 = arith.constant 0 : i32
    %c0_i32_0 = arith.constant 0 : i32
    %c0_i32_1 = arith.constant 0 : i32
    return %c0_i32, %c0_i32_0 : i32, i32
  }
  func.func @transform_6(%arg0: i32) -> (i32, i32) {
    %c0_i32 = arith.constant 0 : i32
    %c0_i32_0 = arith.constant 0 : i32
    %c0_i32_1 = arith.constant 0 : i32
    return %c0_i32, %c0_i32_0 : i32, i32
  }
  func.func @transform_7(%arg0: i32) -> (i32, i32) {
    %c0_i32 = arith.constant 0 : i32
    %c0_i32_0 = arith.constant 0 : i32
    return %arg0, %c0_i32 : i32, i32
  }
}

</mosaic_0001>

<llo_original>
// kernel: _forward_impl.1
$region0: #{_forward_impl.1}
  #allocation0 [shape = 'u32[]', space=smem, size = 0x4, offset = 0x4, fixed_abs, tag = 'smem constant byte address 0x4 - core index']
  #allocation1 [shape = 'u32[144,128]{1,0:T(1,128)}', space=vmem, size = 0x12000, scoped, tag = 'internal scratch']
  %s0 = inlined_call_operand.vmem [shape: f32[8,32], index: 0, kind: input, shape index: {}]
  %s1 = inlined_call_operand.hbm [shape: f32[32,128], index: 1, kind: input, shape index: {}]
  %s2 = inlined_call_operand.vmem [shape: f32[1,128], index: 2, kind: input, shape index: {}]
  %s3 = inlined_call_operand.hbm [shape: f32[128,128], index: 3, kind: input, shape index: {}]
  %s4 = inlined_call_operand.vmem [shape: f32[1,128], index: 4, kind: input, shape index: {}]
  %s5 = inlined_call_operand.hbm [shape: f32[128,128], index: 5, kind: input, shape index: {}]
  %s6 = inlined_call_operand.vmem [shape: f32[1,128], index: 6, kind: input, shape index: {}]
  %s7 = inlined_call_operand.hbm [shape: f32[8,128], index: 7, kind: output, shape index: {}]
  %s8 = sld [smem:[#allocation0]]
  $region50: #{_forward_impl.1} parent=0
    _
  %s10 = ssub.s32 1, %s8
  %s11 = scalar_select 0, %s10, %s8
  $region1: #{_forward_impl.1} parent=0
    #allocation2 [shape = 'u8[16384]{0}', space=vmem, size = 0x4000, scoped, tag = 'input window, operand 1, single buffered']
    #allocation3 [shape = 's32[1]{0}', space=sflag, size = 0x4, scoped, tag = 'scoped memory for _forward_impl.1']
    #allocation4 [shape = 's32[1]{0}', space=sflag, size = 0x4, scoped, tag = 'scoped memory for _forward_impl.1']
    #allocation5 [shape = 'u8[65536]{0}', space=vmem, size = 0x10000, scoped, tag = 'input window, operand 3, single buffered']
    #allocation6 [shape = 's32[1]{0}', space=sflag, size = 0x4, scoped, tag = 'scoped memory for _forward_impl.1']
    #allocation7 [shape = 'u8[65536]{0}', space=vmem, size = 0x10000, scoped, tag = 'input window, operand 5, single buffered']
    #allocation8 [shape = 'u8[4096]{0}', space=vmem, size = 0x1000, scoped, tag = 'output window, operand 0, single buffered']
    %12 = vsyncpa [#allocation3], 0
    %13 = vsyncpa [#allocation6], 0
    %14 = vsyncpa [#allocation4], 0
    // Predicated region
    $region2: #{_forward_impl.1} parent=1 // pred_check
      _
    $region3: #{_forward_impl.1} parent=1 // pred_check_branch
      %16 = sbr.rel (0) target = $region5
    $region4: #{_forward_impl.1} parent=1 // pred_region
      _
    $region5: #{_forward_impl.1} parent=1 // pred_fallthru
      _
    // Predicated region
    $region6: #{_forward_impl.1} parent=1 // pred_check
      _
    $region7: #{_forward_impl.1} parent=1 // pred_check_branch
      %18 = sbr.rel (0) target = $region9
    $region8: #{_forward_impl.1} parent=1 // pred_region
      %s20 = ssub.s32 512, 512
      %21 = vsyncadd [#allocation3], %s20
      %s22 = sshll.u32 [#allocation2], 4
      %s23 = int_to_ptr.vmem [resolvable:$true] %s22
      %28 = dma.hbm_to_vmem [thread:$0]  %s1, 512, %s23, [#allocation3], 128, 128, 8
    $region9: #{_forward_impl.1} parent=1 // pred_fallthru
      _
    // Predicated region
    $region10: #{_forward_impl.1} parent=1 // pred_check
      _
    $region11: #{_forward_impl.1} parent=1 // pred_check_branch
      %30 = sbr.rel (0) target = $region13
    $region12: #{_forward_impl.1} parent=1 // pred_region
      _
    $region13: #{_forward_impl.1} parent=1 // pred_fallthru
      _
    // Predicated region
    $region14: #{_forward_impl.1} parent=1 // pred_check
      _
    $region15: #{_forward_impl.1} parent=1 // pred_check_branch
      %32 = sbr.rel (0) target = $region17
    $region16: #{_forward_impl.1} parent=1 // pred_region
      %s34 = ssub.s32 2048, 2048
      %35 = vsyncadd [#allocation6], %s34
      %s36 = sshll.u32 [#allocation5], 4
      %s37 = int_to_ptr.vmem [resolvable:$true] %s36
      %42 = dma.hbm_to_vmem [thread:$0]  %s3, 2048, %s37, [#allocation6], 128, 128, 8
    $region17: #{_forward_impl.1} parent=1 // pred_fallthru
      _
    // Predicated region
    $region18: #{_forward_impl.1} parent=1 // pred_check
      _
    $region19: #{_forward_impl.1} parent=1 // pred_check_branch
      %44 = sbr.rel (0) target = $region21
    $region20: #{_forward_impl.1} parent=1 // pred_region
      _
    $region21: #{_forward_impl.1} parent=1 // pred_fallthru
      _
    // Predicated region
    $region22: #{_forward_impl.1} parent=1 // pred_check
      _
    $region23: #{_forward_impl.1} parent=1 // pred_check_branch
      %46 = sbr.rel (0) target = $region25
    $region24: #{_forward_impl.1} parent=1 // pred_region
      %s48 = ssub.s32 2048, 2048
      %49 = vsyncadd [#allocation6], %s48
      %s50 = sshll.u32 [#allocation7], 4
      %s51 = int_to_ptr.vmem [resolvable:$true] %s50
      %56 = dma.hbm_to_vmem [thread:$0]  %s5, 2048, %s51, [#allocation6], 128, 128, 8
    $region25: #{_forward_impl.1} parent=1 // pred_fallthru
      _
    // Predicated region
    $region26: #{_forward_impl.1} parent=1 // pred_check
      _
    $region27: #{_forward_impl.1} parent=1 // pred_check_branch
      %58 = sbr.rel (0) target = $region29
    $region28: #{_forward_impl.1} parent=1 // pred_region
      _
    $region29: #{_forward_impl.1} parent=1 // pred_fallthru
      _
    // Predicated region
    $region30: #{_forward_impl.1} parent=1 // pred_check
      _
    $region31: #{_forward_impl.1} parent=1 // pred_check_branch
      %60 = sbr.rel (0) target = $region33
    $region32: #{_forward_impl.1} parent=1 // pred_region
      %61 = dma.done [#allocation3], 512
    $region33: #{_forward_impl.1} parent=1 // pred_fallthru
      _
    // Predicated region
    $region34: #{_forward_impl.1} parent=1 // pred_check
      _
    $region35: #{_forward_impl.1} parent=1 // pred_check_branch
      %63 = sbr.rel (0) target = $region37
    $region36: #{_forward_impl.1} parent=1 // pred_region
      %64 = dma.done [#allocation6], 2048
    $region37: #{_forward_impl.1} parent=1 // pred_fallthru
      _
    // Predicated region
    $region38: #{_forward_impl.1} parent=1 // pred_check
      _
    $region39: #{_forward_impl.1} parent=1 // pred_check_branch
      %66 = sbr.rel (0) target = $region41
    $region40: #{_forward_impl.1} parent=1 // pred_region
      %67 = dma.done [#allocation6], 2048
    $region41: #{_forward_impl.1} parent=1 // pred_fallthru
      _
    %v68 = vld [vmem:[%s0] sm:$0xff]
    %v69 = vld [vmem:[#allocation2] sm:$0xff]
    %v70 = vld [vmem:[#allocation2 + $0x8] sm:$0xff]
    %v71 = vld [vmem:[#allocation2 + $0x10] sm:$0xff]
    %v72 = vld [vmem:[#allocation2 + $0x18] sm:$0xff]
    %v73 = vld [vmem:[%s2] sm:$0x1]
    %v75 = vlaneseq
    %v76 = vshrl.u32 %v75, 7
    %v77 = vsub.s32 0, %v76
    %v78 = vrot.slane %v73, %v77
    %vm80 = vcmask 261120
    %v82 = vsel %vm80, %v68, 0
    %84 = vmatprep.subr.mxu0 0.0
    %85 = vmatpush1.msra.mxu0 0.0
    %86 = vmatprep.subr.mxu0 0.0
    %87 = vmatpush1.msra.mxu0 0.0
    %88 = vmatprep.subr.mxu0 0.0
    %89 = vmatpush1.msra.mxu0 0.0
    %90 = vmatprep.subr.mxu0 0.0
    %91 = vmatpush1.msra.mxu0 0.0
    %92 = vmatprep.subr.mxu0 0.0
    %93 = vmatpush1.msra.mxu0 0.0
    %94 = vmatprep.subr.mxu0 0.0
    %95 = vmatpush1.msra.mxu0 0.0
    %96 = vmatprep.subr.mxu0 0.0
    %97 = vmatpush1.msra.mxu0 0.0
    %98 = vmatprep.subr.mxu0 0.0
    %99 = vmatpush1.msra.mxu0 0.0
    %100 = vmatprep.subr.mxu0 0.0
    %101 = vmatpush1.msra.mxu0 0.0
    %102 = vmatprep.subr.mxu0 0.0
    %103 = vmatpush1.msra.mxu0 0.0
    %104 = vmatprep.subr.mxu0 0.0
    %105 = vmatpush1.msra.mxu0 0.0
    %106 = vmatprep.subr.mxu0 0.0
    %107 = vmatpush1.msra.mxu0 0.0
    %108 = vmatprep.subr.mxu0 0.0
    %109 = vmatpush1.msra.mxu0 %v72
    %110 = vmatprep.subr.mxu0 0.0
    %111 = vmatpush1.msra.mxu0 %v71
    %112 = vmatprep.subr.mxu0 0.0
    %113 = vmatpush1.msra.mxu0 %v70
    %114 = vmatprep.subr.mxu0 0.0
    %115 = vmatpush1.msra.mxu0 %v69
    %116 = vmatprep.subr.mxu0 0.0
    %117 = vmatpush2.msra.mxu0 0.0
    %118 = vmatprep.subr.mxu0 0.0
    %119 = vmatpush2.msra.mxu0 0.0
    %120 = vmatprep.subr.mxu0 0.0
    %121 = vmatpush2.msra.mxu0 0.0
    %122 = vmatprep.subr.mxu0 0.0
    %123 = vmatpush2.msra.mxu0 0.0
    %124 = vmatprep.subr.mxu0 0.0
    %125 = vmatpush2.msra.mxu0 0.0
    %126 = vmatprep.subr.mxu0 0.0
    %127 = vmatpush2.msra.mxu0 0.0
    %128 = vmatprep.subr.mxu0 0.0
    %129 = vmatpush2.msra.mxu0 0.0
    %130 = vmatprep.subr.mxu0 0.0
    %131 = vmatpush2.msra.mxu0 0.0
    %132 = vmatprep.subr.mxu0 0.0
    %133 = vmatpush2.msra.mxu0 0.0
    %134 = vmatprep.subr.mxu0 0.0
    %135 = vmatpush2.msra.mxu0 0.0
    %136 = vmatprep.subr.mxu0 0.0
    %137 = vmatpush2.msra.mxu0 0.0
    %138 = vmatprep.subr.mxu0 0.0
    %139 = vmatpush2.msra.mxu0 0.0
    %140 = vmatprep.subr.mxu0 0.0
    %141 = vmatpush2.msra.mxu0 0.0
    %142 = vmatprep.subr.mxu0 0.0
    %143 = vmatpush2.msra.mxu0 0.0
    %144 = vmatprep.subr.mxu0 0.0
    %145 = vmatpush2.msra.mxu0 0.0
    %146 = vmatprep.subr.mxu0 0.0
    %147 = vmatpush2.msra.mxu0 0.0
    %148 = vmatprep.mubr.f32.mxu0 0.0
    %149 = vmatmul.mubr.f32.gmra.mxu0 %v82
    %v150 = vpop.f32.mrf.mxu0
    %v151 = vadd.f32 %v78, %v150
    %v152 = vpop.f32.mrf.mxu0
    %153 = vdwg.mxu0
    %v154 = vmax.f32 %v151, 0.0
    %v155 = vld [vmem:[#allocation5] sm:$0xff]
    %v156 = vld [vmem:[#allocation5 + $0x8] sm:$0xff]
    %v157 = vld [vmem:[#allocation5 + $0x10] sm:$0xff]
    %v158 = vld [vmem:[#allocation5 + $0x18] sm:$0xff]
    %v159 = vld [vmem:[#allocation5 + $0x20] sm:$0xff]
    %v160 = vld [vmem:[#allocation5 + $0x28] sm:$0xff]
    %v161 = vld [vmem:[#allocation5 + $0x30] sm:$0xff]
    %v162 = vld [vmem:[#allocation5 + $0x38] sm:$0xff]
    %v163 = vld [vmem:[#allocation5 + $0x40] sm:$0xff]
    %v164 = vld [vmem:[#allocation5 + $0x48] sm:$0xff]
    %v165 = vld [vmem:[#allocation5 + $0x50] sm:$0xff]
    %v166 = vld [vmem:[#allocation5 + $0x58] sm:$0xff]
    %v167 = vld [vmem:[#allocation5 + $0x60] sm:$0xff]
    %v168 = vld [vmem:[#allocation5 + $0x68] sm:$0xff]
    %v169 = vld [vmem:[#allocation5 + $0x70] sm:$0xff]
    %v170 = vld [vmem:[#allocation5 + $0x78] sm:$0xff]
    %v171 = vld [vmem:[%s4] sm:$0x1]
    %v173 = vlaneseq
    %v174 = vshrl.u32 %v173, 7
    %v175 = vsub.s32 0, %v174
    %v176 = vrot.slane %v171, %v175
    %178 = vmatprep.subr.mxu0 0.0
    %179 = vmatpush1.msra.mxu0 %v170
    %180 = vmatprep.subr.mxu0 0.0
    %181 = vmatpush1.msra.mxu0 %v169
    %182 = vmatprep.subr.mxu0 0.0
    %183 = vmatpush1.msra.mxu0 %v168
    %184 = vmatprep.subr.mxu0 0.0
    %185 = vmatpush1.msra.mxu0 %v167
    %186 = vmatprep.subr.mxu0 0.0
    %187 = vmatpush1.msra.mxu0 %v166
    %188 = vmatprep.subr.mxu0 0.0
    %189 = vmatpush1.msra.mxu0 %v165
    %190 = vmatprep.subr.mxu0 0.0
    %191 = vmatpush1.msra.mxu0 %v164
    %192 = vmatprep.subr.mxu0 0.0
    %193 = vmatpush1.msra.mxu0 %v163
    %194 = vmatprep.subr.mxu0 0.0
    %195 = vmatpush1.msra.mxu0 %v162
    %196 = vmatprep.subr.mxu0 0.0
    %197 = vmatpush1.msra.mxu0 %v161
    %198 = vmatprep.subr.mxu0 0.0
    %199 = vmatpush1.msra.mxu0 %v160
    %200 = vmatprep.subr.mxu0 0.0
    %201 = vmatpush1.msra.mxu0 %v159
    %202 = vmatprep.subr.mxu0 0.0
    %203 = vmatpush1.msra.mxu0 %v158
    %204 = vmatprep.subr.mxu0 0.0
    %205 = vmatpush1.msra.mxu0 %v157
    %206 = vmatprep.subr.mxu0 0.0
    %207 = vmatpush1.msra.mxu0 %v156
    %208 = vmatprep.subr.mxu0 0.0
    %209 = vmatpush1.msra.mxu0 %v155
    %210 = vmatprep.subr.mxu0 0.0
    %211 = vmatpush2.msra.mxu0 0.0
    %212 = vmatprep.subr.mxu0 0.0
    %213 = vmatpush2.msra.mxu0 0.0
    %214 = vmatprep.subr.mxu0 0.0
    %215 = vmatpush2.msra.mxu0 0.0
    %216 = vmatprep.subr.mxu0 0.0
    %217 = vmatpush2.msra.mxu0 0.0
    %218 = vmatprep.subr.mxu0 0.0
    %219 = vmatpush2.msra.mxu0 0.0
    %220 = vmatprep.subr.mxu0 0.0
    %221 = vmatpush2.msra.mxu0 0.0
    %222 = vmatprep.subr.mxu0 0.0
    %223 = vmatpush2.msra.mxu0 0.0
    %224 = vmatprep.subr.mxu0 0.0
    %225 = vmatpush2.msra.mxu0 0.0
    %226 = vmatprep.subr.mxu0 0.0
    %227 = vmatpush2.msra.mxu0 0.0
    %228 = vmatprep.subr.mxu0 0.0
    %229 = vmatpush2.msra.mxu0 0.0
    %230 = vmatprep.subr.mxu0 0.0
    %231 = vmatpush2.msra.mxu0 0.0
    %232 = vmatprep.subr.mxu0 0.0
    %233 = vmatpush2.msra.mxu0 0.0
    %234 = vmatprep.subr.mxu0 0.0
    %235 = vmatpush2.msra.mxu0 0.0
    %236 = vmatprep.subr.mxu0 0.0
    %237 = vmatpush2.msra.mxu0 0.0
    %238 = vmatprep.subr.mxu0 0.0
    %239 = vmatpush2.msra.mxu0 0.0
    %240 = vmatprep.subr.mxu0 0.0
    %241 = vmatpush2.msra.mxu0 0.0
    %242 = vmatprep.mubr.f32.mxu0 0.0
    %243 = vmatmul.mubr.f32.gmra.mxu0 %v154
    %v244 = vpop.f32.mrf.mxu0
    %v245 = vadd.f32 %v176, %v244
    %v246 = vpop.f32.mrf.mxu0
    %247 = vdwg.mxu0
    %v248 = vmax.f32 %v245, 0.0
    %v249 = vld [vmem:[#allocation7] sm:$0xff]
    %v250 = vld [vmem:[#allocation7 + $0x8] sm:$0xff]
    %v251 = vld [vmem:[#allocation7 + $0x10] sm:$0xff]
    %v252 = vld [vmem:[#allocation7 + $0x18] sm:$0xff]
    %v253 = vld [vmem:[#allocation7 + $0x20] sm:$0xff]
    %v254 = vld [vmem:[#allocation7 + $0x28] sm:$0xff]
    %v255 = vld [vmem:[#allocation7 + $0x30] sm:$0xff]
    %v256 = vld [vmem:[#allocation7 + $0x38] sm:$0xff]
    %v257 = vld [vmem:[#allocation7 + $0x40] sm:$0xff]
    %v258 = vld [vmem:[#allocation7 + $0x48] sm:$0xff]
    %v259 = vld [vmem:[#allocation7 + $0x50] sm:$0xff]
    %v260 = vld [vmem:[#allocation7 + $0x58] sm:$0xff]
    %v261 = vld [vmem:[#allocation7 + $0x60] sm:$0xff]
    %v262 = vld [vmem:[#allocation7 + $0x68] sm:$0xff]
    %v263 = vld [vmem:[#allocation7 + $0x70] sm:$0xff]
    %v264 = vld [vmem:[#allocation7 + $0x78] sm:$0xff]
    %v265 = vld [vmem:[%s6] sm:$0x1]
    %v267 = vlaneseq
    %v268 = vshrl.u32 %v267, 7
    %v269 = vsub.s32 0, %v268
    %v270 = vrot.slane %v265, %v269
    %272 = vmatprep.subr.mxu0 0.0
    %273 = vmatpush1.msra.mxu0 %v264
    %274 = vmatprep.subr.mxu0 0.0
    %275 = vmatpush1.msra.mxu0 %v263
    %276 = vmatprep.subr.mxu0 0.0
    %277 = vmatpush1.msra.mxu0 %v262
    %278 = vmatprep.subr.mxu0 0.0
    %279 = vmatpush1.msra.mxu0 %v261
    %280 = vmatprep.subr.mxu0 0.0
    %281 = vmatpush1.msra.mxu0 %v260
    %282 = vmatprep.subr.mxu0 0.0
    %283 = vmatpush1.msra.mxu0 %v259
    %284 = vmatprep.subr.mxu0 0.0
    %285 = vmatpush1.msra.mxu0 %v258
    %286 = vmatprep.subr.mxu0 0.0
    %287 = vmatpush1.msra.mxu0 %v257
    %288 = vmatprep.subr.mxu0 0.0
    %289 = vmatpush1.msra.mxu0 %v256
    %290 = vmatprep.subr.mxu0 0.0
    %291 = vmatpush1.msra.mxu0 %v255
    %292 = vmatprep.subr.mxu0 0.0
    %293 = vmatpush1.msra.mxu0 %v254
    %294 = vmatprep.subr.mxu0 0.0
    %295 = vmatpush1.msra.mxu0 %v253
    %296 = vmatprep.subr.mxu0 0.0
    %297 = vmatpush1.msra.mxu0 %v252
    %298 = vmatprep.subr.mxu0 0.0
    %299 = vmatpush1.msra.mxu0 %v251
    %300 = vmatprep.subr.mxu0 0.0
    %301 = vmatpush1.msra.mxu0 %v250
    %302 = vmatprep.subr.mxu0 0.0
    %303 = vmatpush1.msra.mxu0 %v249
    %304 = vmatprep.subr.mxu0 0.0
    %305 = vmatpush2.msra.mxu0 0.0
    %306 = vmatprep.subr.mxu0 0.0
    %307 = vmatpush2.msra.mxu0 0.0
    %308 = vmatprep.subr.mxu0 0.0
    %309 = vmatpush2.msra.mxu0 0.0
    %310 = vmatprep.subr.mxu0 0.0
    %311 = vmatpush2.msra.mxu0 0.0
    %312 = vmatprep.subr.mxu0 0.0
    %313 = vmatpush2.msra.mxu0 0.0
    %314 = vmatprep.subr.mxu0 0.0
    %315 = vmatpush2.msra.mxu0 0.0
    %316 = vmatprep.subr.mxu0 0.0
    %317 = vmatpush2.msra.mxu0 0.0
    %318 = vmatprep.subr.mxu0 0.0
    %319 = vmatpush2.msra.mxu0 0.0
    %320 = vmatprep.subr.mxu0 0.0
    %321 = vmatpush2.msra.mxu0 0.0
    %322 = vmatprep.subr.mxu0 0.0
    %323 = vmatpush2.msra.mxu0 0.0
    %324 = vmatprep.subr.mxu0 0.0
    %325 = vmatpush2.msra.mxu0 0.0
    %326 = vmatprep.subr.mxu0 0.0
    %327 = vmatpush2.msra.mxu0 0.0
    %328 = vmatprep.subr.mxu0 0.0
    %329 = vmatpush2.msra.mxu0 0.0
    %330 = vmatprep.subr.mxu0 0.0
    %331 = vmatpush2.msra.mxu0 0.0
    %332 = vmatprep.subr.mxu0 0.0
    %333 = vmatpush2.msra.mxu0 0.0
    %334 = vmatprep.subr.mxu0 0.0
    %335 = vmatpush2.msra.mxu0 0.0
    %336 = vmatprep.mubr.f32.mxu0 0.0
    %337 = vmatmul.mubr.f32.gmra.mxu0 %v248
    %v338 = vpop.f32.mrf.mxu0
    %v339 = vadd.f32 %v270, %v338
    %v340 = vpop.f32.mrf.mxu0
    %341 = vdwg.mxu0
    %342 = vst [vmem:[#allocation8] sm:$0xff] %v339
    // Predicated region
    $region42: #{_forward_impl.1} parent=1 // pred_check
      _
    $region43: #{_forward_impl.1} parent=1 // pred_check_branch
      %344 = sbr.rel (0) target = $region45
    $region44: #{_forward_impl.1} parent=1 // pred_region
      %s346 = ssub.s32 128, 128
      %347 = vsyncadd [#allocation4], %s346
      %s349 = sshll.u32 [#allocation8], 4
      %s350 = int_to_ptr.vmem [resolvable:$true] %s349
      %352 = dma.vmem_to_hbm [thread:$0]  %s350, 128, %s7, [#allocation4]
    $region45: #{_forward_impl.1} parent=1 // pred_fallthru
      _
    // Predicated region
    $region46: #{_forward_impl.1} parent=1 // pred_check
      _
    $region47: #{_forward_impl.1} parent=1 // pred_check_branch
      %354 = sbr.rel (0) target = $region49
    $region48: #{_forward_impl.1} parent=1 // pred_region
      %355 = dma.done [#allocation4], 128
    $region49: #{_forward_impl.1} parent=1 // pred_fallthru
      _
    %356 = vsyncpa [#allocation3], 1
    %357 = vsyncpa [#allocation6], 1
    %358 = vsyncpa [#allocation4], 1

// kernel: _forward_impl.1
$region0: #{_forward_impl.1}
  #allocation0 [shape = 'u32[]', space=smem, size = 0x4, offset = 0x4, fixed_abs, tag = 'smem constant byte address 0x4 - core index']
  #allocation1 [shape = 'u32[144,128]{1,0:T(1,128)}', space=vmem, size = 0x12000, scoped, tag = 'internal scratch']
  %s0 = inlined_call_operand.vmem [shape: f32[8,32], index: 0, kind: input, shape index: {}]
  %s1 = inlined_call_operand.hbm [shape: f32[32,128], index: 1, kind: input, shape index: {}]
  %s2 = inlined_call_operand.vmem [shape: f32[1,128], index: 2, kind: input, shape index: {}]
  %s3 = inlined_call_operand.hbm [shape: f32[128,128], index: 3, kind: input, shape index: {}]
  %s4 = inlined_call_operand.vmem [shape: f32[1,128], index: 4, kind: input, shape index: {}]
  %s5 = inlined_call_operand.hbm [shape: f32[128,128], index: 5, kind: input, shape index: {}]
  %s6 = inlined_call_operand.vmem [shape: f32[1,128], index: 6, kind: input, shape index: {}]
  %s7 = inlined_call_operand.hbm [shape: f32[8,128], index: 7, kind: output, shape index: {}]
  %s8 = sld [smem:[#allocation0]]
  $region50: #{_forward_impl.1} parent=0
    _
  %s10 = ssub.s32 1, %s8
  %s11 = scalar_select 0, %s10, %s8
  $region1: #{_forward_impl.1} parent=0
    #allocation2 [shape = 'u8[16384]{0}', space=vmem, size = 0x4000, scoped, tag = 'input window, operand 1, single buffered']
    #allocation3 [shape = 's32[1]{0}', space=sflag, size = 0x4, scoped, tag = 'scoped memory for _forward_impl.1']
    #allocation4 [shape = 's32[1]{0}', space=sflag, size = 0x4, scoped, tag = 'scoped memory for _forward_impl.1']
    #allocation5 [shape = 'u8[65536]{0}', space=vmem, size = 0x10000, scoped, tag = 'input window, operand 3, single buffered']
    #allocation6 [shape = 's32[1]{0}', space=sflag, size = 0x4, scoped, tag = 'scoped memory for _forward_impl.1']
    #allocation7 [shape = 'u8[65536]{0}', space=vmem, size = 0x10000, scoped, tag = 'input window, operand 5, single buffered']
    #allocation8 [shape = 'u8[4096]{0}', space=vmem, size = 0x1000, scoped, tag = 'output window, operand 0, single buffered']
    %12 = vsyncpa [#allocation3], 0
    %13 = vsyncpa [#allocation6], 0
    %14 = vsyncpa [#allocation4], 0
    // Predicated region
    $region2: #{_forward_impl.1} parent=1 // pred_check
      _
    $region3: #{_forward_impl.1} parent=1 // pred_check_branch
      %16 = sbr.rel (0) target = $region5
    $region4: #{_forward_impl.1} parent=1 // pred_region
      _
    $region5: #{_forward_impl.1} parent=1 // pred_fallthru
      _
    // Predicated region
    $region6: #{_forward_impl.1} parent=1 // pred_check
      _
    $region7: #{_forward_impl.1} parent=1 // pred_check_branch
      %18 = sbr.rel (0) target = $region9
    $region8: #{_forward_impl.1} parent=1 // pred_region
      %s20 = ssub.s32 512, 512
      %21 = vsyncadd [#allocation3], %s20
      %s22 = sshll.u32 [#allocation2], 4
      %s23 = int_to_ptr.vmem [resolvable:$true] %s22
      %28 = dma.hbm_to_vmem [thread:$0]  %s1, 512, %s23, [#allocation3], 128, 128, 8
    $region9: #{_forward_impl.1} parent=1 // pred_fallthru
      _
    // Predicated region
    $region10: #{_forward_impl.1} parent=1 // pred_check
      _
    $region11: #{_forward_impl.1} parent=1 // pred_check_branch
      %30 = sbr.rel (0) target = $region13
    $region12: #{_forward_impl.1} parent=1 // pred_region
      _
    $region13: #{_forward_impl.1} parent=1 // pred_fallthru
      _
    // Predicated region
    $region14: #{_forward_impl.1} parent=1 // pred_check
      _
    $region15: #{_forward_impl.1} parent=1 // pred_check_branch
      %32 = sbr.rel (0) target = $region17
    $region16: #{_forward_impl.1} parent=1 // pred_region
      %s34 = ssub.s32 2048, 2048
      %35 = vsyncadd [#allocation6], %s34
      %s36 = sshll.u32 [#allocation5], 4
      %s37 = int_to_ptr.vmem [resolvable:$true] %s36
      %42 = dma.hbm_to_vmem [thread:$0]  %s3, 2048, %s37, [#allocation6], 128, 128, 8
    $region17: #{_forward_impl.1} parent=1 // pred_fallthru
      _
    // Predicated region
    $region18: #{_forward_impl.1} parent=1 // pred_check
      _
    $region19: #{_forward_impl.1} parent=1 // pred_check_branch
      %44 = sbr.rel (0) target = $region21
    $region20: #{_forward_impl.1} parent=1 // pred_region
      _
    $region21: #{_forward_impl.1} parent=1 // pred_fallthru
      _
    // Predicated region
    $region22: #{_forward_impl.1} parent=1 // pred_check
      _
    $region23: #{_forward_impl.1} parent=1 // pred_check_branch
      %46 = sbr.rel (0) target = $region25
    $region24: #{_forward_impl.1} parent=1 // pred_region
      %s48 = ssub.s32 2048, 2048
      %49 = vsyncadd [#allocation6], %s48
      %s50 = sshll.u32 [#allocation7], 4
      %s51 = int_to_ptr.vmem [resolvable:$true] %s50
      %56 = dma.hbm_to_vmem [thread:$0]  %s5, 2048, %s51, [#allocation6], 128, 128, 8
    $region25: #{_forward_impl.1} parent=1 // pred_fallthru
      _
    // Predicated region
    $region26: #{_forward_impl.1} parent=1 // pred_check
      _
    $region27: #{_forward_impl.1} parent=1 // pred_check_branch
      %58 = sbr.rel (0) target = $region29
    $region28: #{_forward_impl.1} parent=1 // pred_region
      _
    $region29: #{_forward_impl.1} parent=1 // pred_fallthru
      _
    // Predicated region
    $region30: #{_forward_impl.1} parent=1 // pred_check
      _
    $region31: #{_forward_impl.1} parent=1 // pred_check_branch
      %60 = sbr.rel (0) target = $region33
    $region32: #{_forward_impl.1} parent=1 // pred_region
      %61 = dma.done [#allocation3], 512
    $region33: #{_forward_impl.1} parent=1 // pred_fallthru
      _
    // Predicated region
    $region34: #{_forward_impl.1} parent=1 // pred_check
      _
    $region35: #{_forward_impl.1} parent=1 // pred_check_branch
      %63 = sbr.rel (0) target = $region37
    $region36: #{_forward_impl.1} parent=1 // pred_region
      %64 = dma.done [#allocation6], 2048
    $region37: #{_forward_impl.1} parent=1 // pred_fallthru
      _
    // Predicated region
    $region38: #{_forward_impl.1} parent=1 // pred_check
      _
    $region39: #{_forward_impl.1} parent=1 // pred_check_branch
      %66 = sbr.rel (0) target = $region41
    $region40: #{_forward_impl.1} parent=1 // pred_region
      %67 = dma.done [#allocation6], 2048
    $region41: #{_forward_impl.1} parent=1 // pred_fallthru
      _
    %v68 = vld [vmem:[%s0] sm:$0xff]
    %v69 = vld [vmem:[#allocation2] sm:$0xff]
    %v70 = vld [vmem:[#allocation2 + $0x8] sm:$0xff]
    %v71 = vld [vmem:[#allocation2 + $0x10] sm:$0xff]
    %v72 = vld [vmem:[#allocation2 + $0x18] sm:$0xff]
    %v73 = vld [vmem:[%s2] sm:$0x1]
    %v75 = vlaneseq
    %v76 = vshrl.u32 %v75, 7
    %v77 = vsub.s32 0, %v76
    %v78 = vrot.slane %v73, %v77
    %vm80 = vcmask 261120
    %v82 = vsel %vm80, %v68, 0
    %84 = vmatprep.subr.mxu0 0.0
    %85 = vmatpush1.msra.mxu0 0.0
    %86 = vmatprep.subr.mxu0 0.0
    %87 = vmatpush1.msra.mxu0 0.0
    %88 = vmatprep.subr.mxu0 0.0
    %89 = vmatpush1.msra.mxu0 0.0
    %90 = vmatprep.subr.mxu0 0.0
    %91 = vmatpush1.msra.mxu0 0.0
    %92 = vmatprep.subr.mxu0 0.0
    %93 = vmatpush1.msra.mxu0 0.0
    %94 = vmatprep.subr.mxu0 0.0
    %95 = vmatpush1.msra.mxu0 0.0
    %96 = vmatprep.subr.mxu0 0.0
    %97 = vmatpush1.msra.mxu0 0.0
    %98 = vmatprep.subr.mxu0 0.0
    %99 = vmatpush1.msra.mxu0 0.0
    %100 = vmatprep.subr.mxu0 0.0
    %101 = vmatpush1.msra.mxu0 0.0
    %102 = vmatprep.subr.mxu0 0.0
    %103 = vmatpush1.msra.mxu0 0.0
    %104 = vmatprep.subr.mxu0 0.0
    %105 = vmatpush1.msra.mxu0 0.0
    %106 = vmatprep.subr.mxu0 0.0
    %107 = vmatpush1.msra.mxu0 0.0
    %108 = vmatprep.subr.mxu0 0.0
    %109 = vmatpush1.msra.mxu0 %v72
    %110 = vmatprep.subr.mxu0 0.0
    %111 = vmatpush1.msra.mxu0 %v71
    %112 = vmatprep.subr.mxu0 0.0
    %113 = vmatpush1.msra.mxu0 %v70
    %114 = vmatprep.subr.mxu0 0.0
    %115 = vmatpush1.msra.mxu0 %v69
    %116 = vmatprep.subr.mxu0 0.0
    %117 = vmatpush2.msra.mxu0 0.0
    %118 = vmatprep.subr.mxu0 0.0
    %119 = vmatpush2.msra.mxu0 0.0
    %120 = vmatprep.subr.mxu0 0.0
    %121 = vmatpush2.msra.mxu0 0.0
    %122 = vmatprep.subr.mxu0 0.0
    %123 = vmatpush2.msra.mxu0 0.0
    %124 = vmatprep.subr.mxu0 0.0
    %125 = vmatpush2.msra.mxu0 0.0
    %126 = vmatprep.subr.mxu0 0.0
    %127 = vmatpush2.msra.mxu0 0.0
    %128 = vmatprep.subr.mxu0 0.0
    %129 = vmatpush2.msra.mxu0 0.0
    %130 = vmatprep.subr.mxu0 0.0
    %131 = vmatpush2.msra.mxu0 0.0
    %132 = vmatprep.subr.mxu0 0.0
    %133 = vmatpush2.msra.mxu0 0.0
    %134 = vmatprep.subr.mxu0 0.0
    %135 = vmatpush2.msra.mxu0 0.0
    %136 = vmatprep.subr.mxu0 0.0
    %137 = vmatpush2.msra.mxu0 0.0
    %138 = vmatprep.subr.mxu0 0.0
    %139 = vmatpush2.msra.mxu0 0.0
    %140 = vmatprep.subr.mxu0 0.0
    %141 = vmatpush2.msra.mxu0 0.0
    %142 = vmatprep.subr.mxu0 0.0
    %143 = vmatpush2.msra.mxu0 0.0
    %144 = vmatprep.subr.mxu0 0.0
    %145 = vmatpush2.msra.mxu0 0.0
    %146 = vmatprep.subr.mxu0 0.0
    %147 = vmatpush2.msra.mxu0 0.0
    %148 = vmatprep.mubr.f32.mxu0 0.0
    %149 = vmatmul.mubr.f32.gmra.mxu0 %v82
    %v150 = vpop.f32.mrf.mxu0
    %v151 = vadd.f32 %v78, %v150
    %v152 = vpop.f32.mrf.mxu0
    %153 = vdwg.mxu0
    %v154 = vmax.f32 %v151, 0.0
    %v155 = vld [vmem:[#allocation5] sm:$0xff]
    %v156 = vld [vmem:[#allocation5 + $0x8] sm:$0xff]
    %v157 = vld [vmem:[#allocation5 + $0x10] sm:$0xff]
    %v158 = vld [vmem:[#allocation5 + $0x18] sm:$0xff]
    %v159 = vld [vmem:[#allocation5 + $0x20] sm:$0xff]
    %v160 = vld [vmem:[#allocation5 + $0x28] sm:$0xff]
    %v161 = vld [vmem:[#allocation5 + $0x30] sm:$0xff]
    %v162 = vld [vmem:[#allocation5 + $0x38] sm:$0xff]
    %v163 = vld [vmem:[#allocation5 + $0x40] sm:$0xff]
    %v164 = vld [vmem:[#allocation5 + $0x48] sm:$0xff]
    %v165 = vld [vmem:[#allocation5 + $0x50] sm:$0xff]
    %v166 = vld [vmem:[#allocation5 + $0x58] sm:$0xff]
    %v167 = vld [vmem:[#allocation5 + $0x60] sm:$0xff]
    %v168 = vld [vmem:[#allocation5 + $0x68] sm:$0xff]
    %v169 = vld [vmem:[#allocation5 + $0x70] sm:$0xff]
    %v170 = vld [vmem:[#allocation5 + $0x78] sm:$0xff]
    %v171 = vld [vmem:[%s4] sm:$0x1]
    %v173 = vlaneseq
    %v174 = vshrl.u32 %v173, 7
    %v175 = vsub.s32 0, %v174
    %v176 = vrot.slane %v171, %v175
    %178 = vmatprep.subr.mxu0 0.0
    %179 = vmatpush1.msra.mxu0 %v170
    %180 = vmatprep.subr.mxu0 0.0
    %181 = vmatpush1.msra.mxu0 %v169
    %182 = vmatprep.subr.mxu0 0.0
    %183 = vmatpush1.msra.mxu0 %v168
    %184 = vmatprep.subr.mxu0 0.0
    %185 = vmatpush1.msra.mxu0 %v167
    %186 = vmatprep.subr.mxu0 0.0
    %187 = vmatpush1.msra.mxu0 %v166
    %188 = vmatprep.subr.mxu0 0.0
    %189 = vmatpush1.msra.mxu0 %v165
    %190 = vmatprep.subr.mxu0 0.0
    %191 = vmatpush1.msra.mxu0 %v164
    %192 = vmatprep.subr.mxu0 0.0
    %193 = vmatpush1.msra.mxu0 %v163
    %194 = vmatprep.subr.mxu0 0.0
    %195 = vmatpush1.msra.mxu0 %v162
    %196 = vmatprep.subr.mxu0 0.0
    %197 = vmatpush1.msra.mxu0 %v161
    %198 = vmatprep.subr.mxu0 0.0
    %199 = vmatpush1.msra.mxu0 %v160
    %200 = vmatprep.subr.mxu0 0.0
    %201 = vmatpush1.msra.mxu0 %v159
    %202 = vmatprep.subr.mxu0 0.0
    %203 = vmatpush1.msra.mxu0 %v158
    %204 = vmatprep.subr.mxu0 0.0
    %205 = vmatpush1.msra.mxu0 %v157
    %206 = vmatprep.subr.mxu0 0.0
    %207 = vmatpush1.msra.mxu0 %v156
    %208 = vmatprep.subr.mxu0 0.0
    %209 = vmatpush1.msra.mxu0 %v155
    %210 = vmatprep.subr.mxu0 0.0
    %211 = vmatpush2.msra.mxu0 0.0
    %212 = vmatprep.subr.mxu0 0.0
    %213 = vmatpush2.msra.mxu0 0.0
    %214 = vmatprep.subr.mxu0 0.0
    %215 = vmatpush2.msra.mxu0 0.0
    %216 = vmatprep.subr.mxu0 0.0
    %217 = vmatpush2.msra.mxu0 0.0
    %218 = vmatprep.subr.mxu0 0.0
    %219 = vmatpush2.msra.mxu0 0.0
    %220 = vmatprep.subr.mxu0 0.0
    %221 = vmatpush2.msra.mxu0 0.0
    %222 = vmatprep.subr.mxu0 0.0
    %223 = vmatpush2.msra.mxu0 0.0
    %224 = vmatprep.subr.mxu0 0.0
    %225 = vmatpush2.msra.mxu0 0.0
    %226 = vmatprep.subr.mxu0 0.0
    %227 = vmatpush2.msra.mxu0 0.0
    %228 = vmatprep.subr.mxu0 0.0
    %229 = vmatpush2.msra.mxu0 0.0
    %230 = vmatprep.subr.mxu0 0.0
    %231 = vmatpush2.msra.mxu0 0.0
    %232 = vmatprep.subr.mxu0 0.0
    %233 = vmatpush2.msra.mxu0 0.0
    %234 = vmatprep.subr.mxu0 0.0
    %235 = vmatpush2.msra.mxu0 0.0
    %236 = vmatprep.subr.mxu0 0.0
    %237 = vmatpush2.msra.mxu0 0.0
    %238 = vmatprep.subr.mxu0 0.0
    %239 = vmatpush2.msra.mxu0 0.0
    %240 = vmatprep.subr.mxu0 0.0
    %241 = vmatpush2.msra.mxu0 0.0
    %242 = vmatprep.mubr.f32.mxu0 0.0
    %243 = vmatmul.mubr.f32.gmra.mxu0 %v154
    %v244 = vpop.f32.mrf.mxu0
    %v245 = vadd.f32 %v176, %v244
    %v246 = vpop.f32.mrf.mxu0
    %247 = vdwg.mxu0
    %v248 = vmax.f32 %v245, 0.0
    %v249 = vld [vmem:[#allocation7] sm:$0xff]
    %v250 = vld [vmem:[#allocation7 + $0x8] sm:$0xff]
    %v251 = vld [vmem:[#allocation7 + $0x10] sm:$0xff]
    %v252 = vld [vmem:[#allocation7 + $0x18] sm:$0xff]
    %v253 = vld [vmem:[#allocation7 + $0x20] sm:$0xff]
    %v254 = vld [vmem:[#allocation7 + $0x28] sm:$0xff]
    %v255 = vld [vmem:[#allocation7 + $0x30] sm:$0xff]
    %v256 = vld [vmem:[#allocation7 + $0x38] sm:$0xff]
    %v257 = vld [vmem:[#allocation7 + $0x40] sm:$0xff]
    %v258 = vld [vmem:[#allocation7 + $0x48] sm:$0xff]
    %v259 = vld [vmem:[#allocation7 + $0x50] sm:$0xff]
    %v260 = vld [vmem:[#allocation7 + $0x58] sm:$0xff]
    %v261 = vld [vmem:[#allocation7 + $0x60] sm:$0xff]
    %v262 = vld [vmem:[#allocation7 + $0x68] sm:$0xff]
    %v263 = vld [vmem:[#allocation7 + $0x70] sm:$0xff]
    %v264 = vld [vmem:[#allocation7 + $0x78] sm:$0xff]
    %v265 = vld [vmem:[%s6] sm:$0x1]
    %v267 = vlaneseq
    %v268 = vshrl.u32 %v267, 7
    %v269 = vsub.s32 0, %v268
    %v270 = vrot.slane %v265, %v269
    %272 = vmatprep.subr.mxu0 0.0
    %273 = vmatpush1.msra.mxu0 %v264
    %274 = vmatprep.subr.mxu0 0.0
    %275 = vmatpush1.msra.mxu0 %v263
    %276 = vmatprep.subr.mxu0 0.0
    %277 = vmatpush1.msra.mxu0 %v262
    %278 = vmatprep.subr.mxu0 0.0
    %279 = vmatpush1.msra.mxu0 %v261
    %280 = vmatprep.subr.mxu0 0.0
    %281 = vmatpush1.msra.mxu0 %v260
    %282 = vmatprep.subr.mxu0 0.0
    %283 = vmatpush1.msra.mxu0 %v259
    %284 = vmatprep.subr.mxu0 0.0
    %285 = vmatpush1.msra.mxu0 %v258
    %286 = vmatprep.subr.mxu0 0.0
    %287 = vmatpush1.msra.mxu0 %v257
    %288 = vmatprep.subr.mxu0 0.0
    %289 = vmatpush1.msra.mxu0 %v256
    %290 = vmatprep.subr.mxu0 0.0
    %291 = vmatpush1.msra.mxu0 %v255
    %292 = vmatprep.subr.mxu0 0.0
    %293 = vmatpush1.msra.mxu0 %v254
    %294 = vmatprep.subr.mxu0 0.0
    %295 = vmatpush1.msra.mxu0 %v253
    %296 = vmatprep.subr.mxu0 0.0
    %297 = vmatpush1.msra.mxu0 %v252
    %298 = vmatprep.subr.mxu0 0.0
    %299 = vmatpush1.msra.mxu0 %v251
    %300 = vmatprep.subr.mxu0 0.0
    %301 = vmatpush1.msra.mxu0 %v250
    %302 = vmatprep.subr.mxu0 0.0
    %303 = vmatpush1.msra.mxu0 %v249
    %304 = vmatprep.subr.mxu0 0.0
    %305 = vmatpush2.msra.mxu0 0.0
    %306 = vmatprep.subr.mxu0 0.0
    %307 = vmatpush2.msra.mxu0 0.0
    %308 = vmatprep.subr.mxu0 0.0
    %309 = vmatpush2.msra.mxu0 0.0
    %310 = vmatprep.subr.mxu0 0.0
    %311 = vmatpush2.msra.mxu0 0.0
    %312 = vmatprep.subr.mxu0 0.0
    %313 = vmatpush2.msra.mxu0 0.0
    %314 = vmatprep.subr.mxu0 0.0
    %315 = vmatpush2.msra.mxu0 0.0
    %316 = vmatprep.subr.mxu0 0.0
    %317 = vmatpush2.msra.mxu0 0.0
    %318 = vmatprep.subr.mxu0 0.0
    %319 = vmatpush2.msra.mxu0 0.0
    %320 = vmatprep.subr.mxu0 0.0
    %321 = vmatpush2.msra.mxu0 0.0
    %322 = vmatprep.subr.mxu0 0.0
    %323 = vmatpush2.msra.mxu0 0.0
    %324 = vmatprep.subr.mxu0 0.0
    %325 = vmatpush2.msra.mxu0 0.0
    %326 = vmatprep.subr.mxu0 0.0
    %327 = vmatpush2.msra.mxu0 0.0
    %328 = vmatprep.subr.mxu0 0.0
    %329 = vmatpush2.msra.mxu0 0.0
    %330 = vmatprep.subr.mxu0 0.0
    %331 = vmatpush2.msra.mxu0 0.0
    %332 = vmatprep.subr.mxu0 0.0
    %333 = vmatpush2.msra.mxu0 0.0
    %334 = vmatprep.subr.mxu0 0.0
    %335 = vmatpush2.msra.mxu0 0.0
    %336 = vmatprep.mubr.f32.mxu0 0.0
    %337 = vmatmul.mubr.f32.gmra.mxu0 %v248
    %v338 = vpop.f32.mrf.mxu0
    %v339 = vadd.f32 %v270, %v338
    %v340 = vpop.f32.mrf.mxu0
    %341 = vdwg.mxu0
    %342 = vst [vmem:[#allocation8] sm:$0xff] %v339
    // Predicated region
    $region42: #{_forward_impl.1} parent=1 // pred_check
      _
    $region43: #{_forward_impl.1} parent=1 // pred_check_branch
      %344 = sbr.rel (0) target = $region45
    $region44: #{_forward_impl.1} parent=1 // pred_region
      %s346 = ssub.s32 128, 128
      %347 = vsyncadd [#allocation4], %s346
      %s349 = sshll.u32 [#allocation8], 4
      %s350 = int_to_ptr.vmem [resolvable:$true] %s349
      %352 = dma.vmem_to_hbm [thread:$0]  %s350, 128, %s7, [#allocation4]
    $region45: #{_forward_impl.1} parent=1 // pred_fallthru
      _
    // Predicated region
    $region46: #{_forward_impl.1} parent=1 // pred_check
      _
    $region47: #{_forward_impl.1} parent=1 // pred_check_branch
      %354 = sbr.rel (0) target = $region49
    $region48: #{_forward_impl.1} parent=1 // pred_region
      %355 = dma.done [#allocation4], 128
    $region49: #{_forward_impl.1} parent=1 // pred_fallthru
      _
    %356 = vsyncpa [#allocation3], 1
    %357 = vsyncpa [#allocation6], 1
    %358 = vsyncpa [#allocation4], 1

</llo_original>
